<compile_context>
chip_gen: v7x
topology: tpu7x:2x2x1
jax: 0.10.0
libtpu: 0.0.40
codegen_flags: <defaults>
</compile_context>

<pallas_src>
import functools

import numpy as np
import jax
import jax.numpy as jnp
from jax import lax
from jax.experimental import pallas as pl
from jax.experimental.pallas import tpu as pltpu

EPS = 2e-5  # BatchNorm eps from the PyTorch module


# ==========================================================================
# 1) SwishV1 -- the literal PyTorch module: feat * sigmoid(feat)
#    Lane-dense (rows, 128) view, tiled + pipelined along rows.
# ==========================================================================
_LANES = 128
_TILE_ROWS = 2048                      # 2048 * 128 * 4B = 1 MiB per f32 block


def _swish_kernel(x_ref, o_ref):
    x = x_ref[...]
    o_ref[...] = (x * jax.nn.sigmoid(x)).astype(o_ref.dtype)


def swish_v1_pallas(x):
    shape = x.shape
    total = int(np.prod(shape)) if shape else 1
    if total % _LANES == 0:
        # common case: pure reshape, no extra HBM pad/copy before the kernel.
        rows = total // _LANES
        xf = x.reshape(rows, _LANES)
        padded = False
    else:
        # ragged fallback: pad the flat tail up to one lane row only.
        # TODO(synk): for huge ragged tensors, run the aligned prefix unpadded
        # and only pad the final <128-element tail.
        rows = -(-total // _LANES)
        xf = jnp.pad(x.reshape(-1), (0, rows * _LANES - total))
        xf = xf.reshape(rows, _LANES)
        padded = True

    tile_r = rows if rows <= _TILE_ROWS else _TILE_ROWS
    grid = (pl.cdiv(rows, tile_r),)

    out = pl.pallas_call(
        _swish_kernel,
        out_shape=jax.ShapeDtypeStruct((rows, _LANES), x.dtype),
        grid=grid,
        in_specs=[pl.BlockSpec((tile_r, _LANES), lambda i: (i, 0))],
        out_specs=pl.BlockSpec((tile_r, _LANES), lambda i: (i, 0)),
        compiler_params=pltpu.CompilerParams(
            dimension_semantics=("parallel",)),
    )(xf)
    if padded:
        return out.reshape(-1)[:total].reshape(shape)
    return out.reshape(shape)


# ==========================================================================
# 2) Fused vargnet_branch_merge_block (the context this SwishV1 lives in):
#       short_cut(x)                    : sep_conv c1->c3, stride
#       b1 = Swish(part1(x))            : sep_conv c1->c2, stride
#       out = Swish(part2(b1) + short_cut)
#    Each sep_conv = depthwise kxk (groups=Cin, mult=expansion) -> folded BN
#    -> SwishV1 -> pointwise 1x1 (MXU, bf16 operands / f32 acc) -> folded BN.
#    One pallas_call; NB images per grid step stacked along sublanes.
# ==========================================================================
def _fused_block_kernel(k, stride, expansion, nb, hout, wout, c1, c2, c3,
                        xph_ref,
                        sc_wdw, sc_dws, sc_dwb, sc_wbig, sc_pws, sc_pwb,
                        p1_wdw, p1_dws, p1_dwb, p1_wbig, p1_pws, p1_pwb,
                        p2_wdw, p2_dws, p2_dwb, p2_wbig, p2_pws, p2_pwb,
                        o_ref):
    f32 = jnp.float32
    rows = nb * hout
    pad2 = k // 2

    def sep(patches, wdw_ref, dws_ref, dwb_ref, wbig_ref, pws_ref, pwb_ref):
        """One separable_conv2d on W*C-lane-packed, batch-stacked patches."""
        wdw = wdw_ref[...]            # (E, k, k, wout*cin)   per-e slices
        dws = dws_ref[...]            # (E, wout*cin)
        dwb = dwb_ref[...]
        y = None
        for e in range(expansion):
            acc = jnp.zeros_like(patches[0])
            t = 0
            for ky in range(k):
                for kx in range(k):
                    acc = acc + patches[t] * wdw[e, ky, kx, :]
                    t += 1
            h = acc * dws[e, :] + dwb[e, :]            # folded dw BN (f32)
            h = h * jax.nn.sigmoid(h)                  # SwishV1 (f32 VPU/EUP)
            # pointwise 1x1 conv on the MXU: bf16 operands, f32 accumulation;
            # block-diagonal weight emits the lane-dense (rows, wout*cout)
            # layout directly so stores stay unmasked.
            contrib = jnp.dot(h.astype(wbig_ref.dtype), wbig_ref[e],
                              preferred_element_type=f32)
            y = contrib if y is None else y + contrib
        return y * pws_ref[...] + pwb_ref[...]         # folded pw BN (f32)

    # ---- stride-`stride` patches of the (shared) phase-split input, with
    #      NB images stacked along the sublane / matmul-M axis ---------------
    # TODO(synk): at these toy channel counts only wph*c1=36 of 128 lanes are
    # live in the depthwise/Swish path; pack two phases/images along the lane
    # axis once the VPU/EUP slot becomes the binding unit.
    xph = xph_ref[...]                                 # (nb, s*s, hph, wph*c1)
    x_patches = []
    for ky in range(k):
        for kx in range(k):
            p = (ky % stride) * stride + (kx % stride)
            r0, c0 = ky // stride, kx // stride
            patch = xph[:, p, r0:r0 + hout, c0 * c1:(c0 + wout) * c1]
            x_patches.append(patch.reshape(rows, wout * c1))

    # short_cut: c1 -> c3, stride, no swish on the pointwise output
    sc = sep(x_patches, sc_wdw, sc_dws, sc_dwb, sc_wbig, sc_pws, sc_pwb)

    # part_1_branch_1 followed by relu_1 (SwishV1)
    b1 = sep(x_patches, p1_wdw, p1_dws, p1_dwb, p1_wbig, p1_pws, p1_pwb)
    b1 = b1 * jax.nn.sigmoid(b1)

    # part_2: stride-1 conv on b1; zero halo built on-chip, per image.
    # TODO(synk): replace these concats with a resident pre-zeroed VMEM
    # scratch once wout*c2 grows past toy sizes (perf-review item 8).
    b1img = b1.reshape(nb, hout, wout * c2)
    zrow = jnp.zeros((nb, pad2, wout * c2), f32)
    zcol = jnp.zeros((nb, hout + 2 * pad2, pad2 * c2), f32)
    b1p = jnp.concatenate([zrow, b1img, zrow], axis=1)
    b1p = jnp.concatenate([zcol, b1p, zcol], axis=2)   # (nb, hout+2p, (wout+2p)*c2)
    b1_patches = []
    for ky in range(k):
        for kx in range(k):
            patch = b1p[:, ky:ky + hout, kx * c2:(kx + wout) * c2]
            b1_patches.append(patch.reshape(rows, wout * c2))

    y2 = sep(b1_patches, p2_wdw, p2_dws, p2_dwb, p2_wbig, p2_pws, p2_pwb)
    out = y2 + sc                                      # merge with short_cut
    out = out * jax.nn.sigmoid(out)                    # relu_2 (SwishV1)
    o_ref[...] = out.reshape(nb, hout, wout * c3).astype(o_ref.dtype)


def _pack_sep_params(p, *, cin, cout, expansion, k, wout,
                     mxu_dtype=jnp.bfloat16):
    """Repack original-layout folded sep-conv params into the W*C-lane layout.

    Expanded (grouped-conv) channel index is c*expansion + e; the channel
    expansion is absorbed into per-e weight slices so the activation is never
    repeated in HBM or VMEM.  The pointwise weight is stored in bf16 (MXU
    operand dtype); all BN params stay f32.
    """
    E = expansion
    wdw = jnp.transpose(p["wdw"].reshape(k, k, cin, E), (3, 0, 1, 2))  # (E,k,k,cin)
    wdw_t = jnp.tile(wdw[:, :, :, None, :], (1, 1, 1, wout, 1))
    wdw_t = wdw_t.reshape(E, k, k, wout * cin)
    dws = jnp.transpose(p["dw_scale"].reshape(cin, E), (1, 0))         # (E,cin)
    dwb = jnp.transpose(p["dw_bias"].reshape(cin, E), (1, 0))
    dws_t = jnp.tile(dws[:, None, :], (1, wout, 1)).reshape(E, wout * cin)
    dwb_t = jnp.tile(dwb[:, None, :], (1, wout, 1)).reshape(E, wout * cin)
    # block-diagonal pointwise weight: (wout*cin, wout*cout) per e, so the
    # 1x1 conv is one MXU matmul emitting the lane-dense output layout.
    # TODO(synk): this kron expansion grows as wout^2*cin*cout; on v7x
    # (64 MiB VMEM) fall back to a (hout*wout, cin) x (cin, cout) layout or
    # tile wout for large feature maps.
    eye = jnp.eye(wout, dtype=jnp.float32)
    wpw = p["wpw"].reshape(cin, E, cout)                               # (cin,E,cout)
    wbig = jnp.stack([jnp.kron(eye, wpw[:, e, :]) for e in range(E)], axis=0)
    wbig = wbig.astype(mxu_dtype)
    pws_t = jnp.tile(p["pw_scale"], wout).reshape(1, wout * cout)
    pwb_t = jnp.tile(p["pw_bias"], wout).reshape(1, wout * cout)
    return dict(wdw=wdw_t, dws=dws_t, dwb=dwb_t, wbig=wbig,
                pws=pws_t, pwb=pwb_t)


def _pick_batch_tile(n, hout):
    """Largest divisor of n with M = nb*hout <= ~128 rows, keeping the grid
    length >= 2 whenever n >= 2 (so both v7x TensorCores stay busy)."""
    target = max(1, 128 // max(hout, 1))
    best = 1
    for d in range(1, n + 1):
        if n % d == 0 and d <= target and n // d >= min(2, n):
            best = d
    return best


def vargnet_branch_merge_block_pallas(x, params, *, kernel_size=3, stride=2,
                                      expansion=2, batch_tile=None):
    """x: (N, H, W, C1) float32.  params: original-layout folded params."""
    N, H, W, c1 = x.shape
    c2 = params["part1"]["wpw"].shape[1]
    c3 = params["short_cut"]["wpw"].shape[1]
    k = kernel_size
    pad = k // 2
    hout = (H + 2 * pad - k) // stride + 1
    wout = (W + 2 * pad - k) // stride + 1
    assert (H + 2 * pad) % stride == 0 and (W + 2 * pad) % stride == 0, \
        "specialized to an exact stride-phase split"
    hph = (H + 2 * pad) // stride
    wph = (W + 2 * pad) // stride
    assert hph >= hout + (k - 1) // stride
    assert wph >= wout + (k - 1) // stride

    nb = batch_tile if batch_tile is not None else _pick_batch_tile(N, hout)
    assert N % nb == 0, (N, nb)

    # ---- glue: pad + stride-phase split of the raw input (done ONCE, shared
    #      by short_cut and part1), W*C packed into lanes --------------------
    # TODO(synk): at production feature-map sizes, DMA the phases straight out
    # of the raw NHWC array inside the kernel (memory_space=pl.ANY +
    # make_async_copy) instead of materializing this second HBM copy.
    xp = jnp.pad(x, ((0, 0), (pad, pad), (pad, pad), (0, 0)))
    phases = []
    for r in range(stride):
        for c in range(stride):
            ph = xp[:, r::stride, c::stride, :]           # (N, hph, wph, c1)
            phases.append(ph.reshape(N, hph, wph * c1))
    xph = jnp.stack(phases, axis=1)                       # (N, s*s, hph, wph*c1)

    # ---- glue: repack the (tiny) folded parameters into the lane layout ----
    sc_p = _pack_sep_params(params["short_cut"], cin=c1, cout=c3,
                            expansion=expansion, k=k, wout=wout)
    p1_p = _pack_sep_params(params["part1"], cin=c1, cout=c2,
                            expansion=expansion, k=k, wout=wout)
    p2_p = _pack_sep_params(params["part2"], cin=c2, cout=c3,
                            expansion=expansion, k=k, wout=wout)

    def full_spec(a):
        nd = a.ndim
        return pl.BlockSpec(a.shape, lambda n, _nd=nd: (0,) * _nd)

    in_specs = [pl.BlockSpec((nb, stride * stride, hph, wph * c1),
                             lambda n: (n, 0, 0, 0))]
    param_args = []
    for pk in (sc_p, p1_p, p2_p):
        for name in ("wdw", "dws", "dwb", "wbig", "pws", "pwb"):
            a = pk[name]
            param_args.append(a)
            in_specs.append(full_spec(a))

    kernel = functools.partial(_fused_block_kernel, k, stride, expansion,
                               nb, hout, wout, c1, c2, c3)

    out = pl.pallas_call(
        kernel,
        out_shape=jax.ShapeDtypeStruct((N, hout, wout * c3), jnp.float32),
        grid_spec=pltpu.PrefetchScalarGridSpec(
            num_scalar_prefetch=0,
            grid=(N // nb,),
            in_specs=in_specs,
            out_specs=pl.BlockSpec((nb, hout, wout * c3),
                                   lambda n: (n, 0, 0)),
        ),
        compiler_params=pltpu.CompilerParams(
            dimension_semantics=("parallel",)),
    )(xph, *param_args)

    return out.reshape(N, hout, wout, c3)


# --------------------------------------------------------------------------
# deterministic parameter construction (eval-mode BatchNorm folded)
# --------------------------------------------------------------------------
def make_sep_params(key, cin, cout, expansion, kernel_size):
    ce = cin * expansion
    ks = jax.random.split(key, 10)
    wdw = 0.3 * jax.random.normal(ks[0], (kernel_size, kernel_size, ce),
                                  jnp.float32)
    dw_gamma = 1.0 + 0.2 * jax.random.normal(ks[1], (ce,), jnp.float32)
    dw_beta = 0.1 * jax.random.normal(ks[2], (ce,), jnp.float32)
    dw_mean = 0.1 * jax.random.normal(ks[3], (ce,), jnp.float32)
    dw_var = jax.random.uniform(ks[4], (ce,), jnp.float32, 0.5, 1.5)
    wpw = jax.random.normal(ks[5], (ce, cout), jnp.float32) / np.sqrt(ce)
    pw_gamma = 1.0 + 0.2 * jax.random.normal(ks[6], (cout,), jnp.float32)
    pw_beta = 0.1 * jax.random.normal(ks[7], (cout,), jnp.float32)
    pw_mean = 0.1 * jax.random.normal(ks[8], (cout,), jnp.float32)
    pw_var = jax.random.uniform(ks[9], (cout,), jnp.float32, 0.5, 1.5)
    dw_scale = dw_gamma / jnp.sqrt(dw_var + EPS)
    pw_scale = pw_gamma / jnp.sqrt(pw_var + EPS)
    return dict(wdw=wdw, wpw=wpw,
                dw_scale=dw_scale, dw_bias=dw_beta - dw_mean * dw_scale,
                pw_scale=pw_scale, pw_bias=pw_beta - pw_mean * pw_scale)


# --------------------------------------------------------------------------
# pure-JAX reference (same semantics) for validation.  mxu_dtype=bfloat16
# matches the kernel's MXU operand precision (f32 accumulation, f32
# elementwise) so the comparison isolates kernel bugs from the deliberate
# bf16-MXU precision choice requested by the perf review.
# --------------------------------------------------------------------------
def sep_conv_ref(x, p, *, kernel_size, stride, expansion, out_swish,
                 residual=None, mxu_dtype=jnp.bfloat16):
    cin = x.shape[-1]
    pad = kernel_size // 2
    rhs = p["wdw"][:, :, None, :]              # (k, k, 1, cin*expansion)
    h = lax.conv_general_dilated(
        x, rhs, window_strides=(stride, stride),
        padding=((pad, pad), (pad, pad)),
        dimension_numbers=("NHWC", "HWIO", "NHWC"),
        feature_group_count=cin, precision=lax.Precision.HIGHEST)
    h = h * p["dw_scale"] + p["dw_bias"]
    h = h * jax.nn.sigmoid(h)
    y = jnp.einsum("nhwc,cd->nhwd", h.astype(mxu_dtype),
                   p["wpw"].astype(mxu_dtype),
                   preferred_element_type=jnp.float32)
    y = y.astype(jnp.float32) * p["pw_scale"] + p["pw_bias"]
    if residual is not None:
        y = y + residual
    if out_swish:
        y = y * jax.nn.sigmoid(y)
    return y


def vargnet_ref(x, params, *, kernel_size=3, stride=2, expansion=2,
                mxu_dtype=jnp.bfloat16):
    sc = sep_conv_ref(x, params["short_cut"], kernel_size=kernel_size,
                      stride=stride, expansion=expansion, out_swish=False,
                      mxu_dtype=mxu_dtype)
    b1 = sep_conv_ref(x, params["part1"], kernel_size=kernel_size,
                      stride=stride, expansion=expansion, out_swish=True,
                      mxu_dtype=mxu_dtype)
    return sep_conv_ref(b1, params["part2"], kernel_size=kernel_size, stride=1,
                        expansion=expansion, out_swish=True, residual=sc,
                        mxu_dtype=mxu_dtype)


if __name__ == "__main__":
    key = jax.random.PRNGKey(0)
    kx1, kx2, kx3, k1, k2, k3 = jax.random.split(key, 6)

    # --- the SwishV1 module itself ------------------------------------------
    # aligned case (no pad copy), ragged case (tail path), and a multi-tile
    # case exercising the pipelined grid.
    for shp, kk in (((2, 4, 16, 16), kx1),
                    ((3, 7, 11), kx2),
                    ((8, 3, 160, 160), kx3)):
        xin = jax.random.normal(kk, shp, jnp.float32)
        sw = jax.block_until_ready(swish_v1_pallas(xin))
        sw_ref = xin * jax.nn.sigmoid(xin)
        if not np.allclose(np.asarray(sw), np.asarray(sw_ref),
                           atol=2e-5, rtol=2e-5):
            raise AssertionError(
                "SwishV1 mismatch at %s, max abs err = %g"
                % (shp, float(jnp.max(jnp.abs(sw - sw_ref)))))

    # --- fused block that uses SwishV1 throughout ---------------------------
    # channels_1=4, channels_2=8, channels_3=16, expansion=2, k=3, stride=2
    N, C1, C2, C3, H, W = 8, 4, 8, 16, 16, 16
    x_nchw = jax.random.normal(kx1, (N, C1, H, W), jnp.float32)
    x = jnp.transpose(x_nchw, (0, 2, 3, 1))    # NCHW -> NHWC
    params = {
        "short_cut": make_sep_params(k1, C1, C3, 2, 3),
        "part1":     make_sep_params(k2, C1, C2, 2, 3),
        "part2":     make_sep_params(k3, C2, C3, 2, 3),
    }

    out = jax.block_until_ready(vargnet_branch_merge_block_pallas(x, params))
    assert out.shape == (N, H // 2, W // 2, C3), out.shape

    ref = jax.block_until_ready(vargnet_ref(x, params,
                                            mxu_dtype=jnp.bfloat16))
    if not np.allclose(np.asarray(out), np.asarray(ref), atol=1e-2, rtol=1e-2):
        raise AssertionError(
            "block mismatch, max abs err = %g"
            % float(jnp.max(jnp.abs(out - ref))))

    print("KERNEL_OK")
</pallas_src>

<mosaic_0001>
module attributes {stable_mosaic.version = 11 : i64} {
  func.func @_swish_kernel(%arg0: i32, %arg1: memref<16x128xf32, #tpu.memory_space<vmem>>, %arg2: memref<16x128xf32, #tpu.memory_space<vmem>>) attributes {dimension_semantics = [#tpu.dimension_semantics<parallel>], iteration_bounds = array<i64: 1>, scalar_prefetch = 0 : i64, scratch_operands = 0 : i64, tpu.core_type = #tpu.core_type<tc>, window_params = [{transform_indices = @transform_0, window_bounds = array<i64: 16, 128>}, {transform_indices = @transform_1, window_bounds = array<i64: 16, 128>}]} {
    %c0 = arith.constant 0 : index
    %c0_0 = arith.constant 0 : index
    %0 = vector.load %arg1[%c0, %c0_0] : memref<16x128xf32, #tpu.memory_space<vmem>>, vector<16x128xf32>
    %1 = arith.negf %0 : vector<16x128xf32>
    %2 = math.exp %1 : vector<16x128xf32>
    %cst = arith.constant 1.000000e+00 : f32
    %3 = vector.broadcast %cst : f32 to vector<16x128xf32>
    %4 = arith.addf %3, %2 : vector<16x128xf32>
    %5 = arith.divf %3, %4 : vector<16x128xf32>
    %6 = arith.mulf %0, %5 : vector<16x128xf32>
    %c0_1 = arith.constant 0 : index
    %c0_2 = arith.constant 0 : index
    %7 = vector.load %arg2[%c0_1, %c0_2] : memref<16x128xf32, #tpu.memory_space<vmem>>, vector<16x128xf32>
    tpu.vector_store %arg2[%c0_1, %c0_2], %6 {strides = array<i32>} : memref<16x128xf32, #tpu.memory_space<vmem>>, vector<16x128xf32>,
    return
  }
  func.func @transform_0(%arg0: i32) -> (i32, i32) {
    %c0_i32 = arith.constant 0 : i32
    %c0_i32_0 = arith.constant 0 : i32
    return %arg0, %c0_i32 : i32, i32
  }
  func.func @transform_1(%arg0: i32) -> (i32, i32) {
    %c0_i32 = arith.constant 0 : i32
    %c0_i32_0 = arith.constant 0 : i32
    return %arg0, %c0_i32 : i32, i32
  }
}

</mosaic_0001>

<llo_original>
// kernel: tpu_custom_call.1
$region0: #{tpu_custom_call.1}
  #allocation0 [shape = 'u32[]', space=smem, size = 0x4, offset = 0x4, fixed_abs, tag = 'smem constant byte address 0x4 - core index']
  #allocation1 [shape = 'u32[144,128]{1,0:T(1,128)}', space=vmem, size = 0x12000, scoped, tag = 'internal scratch']
  %s0 = inlined_call_operand.hbm [shape: f32[16,128], index: 0, kind: input, shape index: {}]
  %s1 = inlined_call_operand.hbm [shape: f32[16,128], index: 1, kind: output, shape index: {}]
  %s2 = sld [smem:[#allocation0]]
  $region18: #{tpu_custom_call.1} parent=0
    _
  %s4 = ssub.s32 1, %s2
  %s5 = scalar_select 0, %s4, %s2
  $region1: #{tpu_custom_call.1} parent=0
    #allocation2 [shape = 'u8[8192]{0}', space=vmem, size = 0x2000, scoped, tag = 'input window, operand 0, single buffered']
    #allocation3 [shape = 's32[1]{0}', space=sflag, size = 0x4, scoped, tag = 'scoped memory for tpu_custom_call.1']
    #allocation4 [shape = 's32[1]{0}', space=sflag, size = 0x4, scoped, tag = 'scoped memory for tpu_custom_call.1']
    #allocation5 [shape = 'u8[8192]{0}', space=vmem, size = 0x2000, scoped, tag = 'output window, operand 0, single buffered']
    %6 = vsyncpa [#allocation3], 0
    %7 = vsyncpa [#allocation4], 0
    // Predicated region
    $region2: #{tpu_custom_call.1} parent=1 // pred_check
      _
    $region3: #{tpu_custom_call.1} parent=1 // pred_check_branch
      %9 = sbr.rel (0) target = $region5
    $region4: #{tpu_custom_call.1} parent=1 // pred_region
      %s11 = ssub.s32 256, 256
      %12 = vsyncadd [#allocation3], %s11
      %s13 = sshll.u32 [#allocation2], 4
      %s14 = int_to_ptr.vmem [resolvable:$true] %s13
      %19 = dma.hbm_to_vmem [thread:$0]  %s0, 256, %s14, [#allocation3], 128, 128, 8
    $region5: #{tpu_custom_call.1} parent=1 // pred_fallthru
      _
    // Predicated region
    $region6: #{tpu_custom_call.1} parent=1 // pred_check
      _
    $region7: #{tpu_custom_call.1} parent=1 // pred_check_branch
      %21 = sbr.rel (0) target = $region9
    $region8: #{tpu_custom_call.1} parent=1 // pred_region
      %22 = dma.done [#allocation3], 256
    $region9: #{tpu_custom_call.1} parent=1 // pred_fallthru
      _
    %v23 = vld [vmem:[#allocation2] sm:$0xff]
    %v24 = vld [vmem:[#allocation2 + $0x8] sm:$0xff]
    %v25 = vxor.u32 %v23, 2147483648
    %v26 = vxor.u32 %v24, 2147483648
    %v27 = vmul.f32 %v25, 1.442695
    %v28 = vpow.pop %v27
    %v29 = vmul.f32 %v26, 1.442695
    %v30 = vpow.pop %v29
    %v31 = vadd.f32 %v28, 1.0
    %v32 = vadd.f32 %v30, 1.0
    %v33 = vrcp.pop %v31
    %v34 = vmul.f32 1.0, %v33
    %v35 = vrcp.pop %v32
    %v36 = vmul.f32 1.0, %v35
    %v37 = vmul.f32 %v23, %v34
    %v38 = vmul.f32 %v24, %v36
    %39 = vst [vmem:[#allocation5] sm:$0xff] %v37
    %40 = vst [vmem:[#allocation5 + $0x8] sm:$0xff] %v38
    // Predicated region
    $region10: #{tpu_custom_call.1} parent=1 // pred_check
      _
    $region11: #{tpu_custom_call.1} parent=1 // pred_check_branch
      %42 = sbr.rel (0) target = $region13
    $region12: #{tpu_custom_call.1} parent=1 // pred_region
      %s44 = ssub.s32 256, 256
      %45 = vsyncadd [#allocation4], %s44
      %s46 = sshll.u32 [#allocation5], 4
      %s47 = int_to_ptr.vmem [resolvable:$true] %s46
      %52 = dma.vmem_to_hbm [thread:$0]  %s47, 256, %s1, [#allocation4], 128, 128, 8
    $region13: #{tpu_custom_call.1} parent=1 // pred_fallthru
      _
    // Predicated region
    $region14: #{tpu_custom_call.1} parent=1 // pred_check
      _
    $region15: #{tpu_custom_call.1} parent=1 // pred_check_branch
      %54 = sbr.rel (0) target = $region17
    $region16: #{tpu_custom_call.1} parent=1 // pred_region
      %55 = dma.done [#allocation4], 256
    $region17: #{tpu_custom_call.1} parent=1 // pred_fallthru
      _
    %56 = vsyncpa [#allocation3], 1
    %57 = vsyncpa [#allocation4], 1

</llo_original>
